<compile_context>
chip_gen: v6e
topology: v6e:2x2x1
jax: 0.10.0
libtpu: 0.0.40
codegen_flags: <defaults>
</compile_context>

<pallas_src>
import jax
import jax.numpy as jnp
import numpy as np
from jax import lax
from jax.experimental import pallas as pl
from jax.experimental.pallas import tpu as pltpu


# ----------------------------------------------------------------------------
# Pallas kernel: fused bidirectional LSTM, whole sequence in one invocation.
# ----------------------------------------------------------------------------
def _bilstm_fused_kernel(x_ref, m_ref, wih_ref, whh_ref, b_ref,
                         out_ref, hT_ref):
    """Fused bidirectional LSTM.

    x_ref  : (T*B, 2D)  time-major flattened [x_fwd | x_rev]        f32
    m_ref  : (T*B, 2H)  validity mask (1.0 while t < length[b])     f32
    wih_ref: (2D, 8H)   block-diag input weights, i/f/o cols *0.5   f32
    whh_ref: (2H, 8H)   block-diag recurrent weights, i/f/o *0.5    bf16
    b_ref  : (1, 8H)    fused bias (b_ih+b_hh, both dirs), i/f/o *0.5
    out_ref: (B, T*2H)  per-step hidden, lane-dense [t0 | t1 | ...] f32
    hT_ref : (B, 2H)    final hidden [h_f | h_b]                    f32
    """
    B, G = hT_ref.shape                      # G = 2H (both directions fused)
    T = out_ref.shape[1] // G

    # (1) Input projection hoisted out of the recurrence: one MXU op over all
    #     timesteps; result stays resident for the whole loop.
    xproj = (jnp.dot(x_ref[...], wih_ref[...],
                     preferred_element_type=jnp.float32)
             + b_ref[...])                                         # (T*B, 4G)

    whh = whh_ref[...]                       # bf16, pre-scaled i/f/o columns
    m_all = m_ref[...] != 0.0                # bool mask, one compare up front

    h = jnp.zeros((B, G), jnp.float32)
    c = jnp.zeros((B, G), jnp.float32)
    out_chunks = []

    # T is small and static -> fully unrolled recurrence; every slice offset
    # below is a static multiple of 8 sublanes / 64 lanes.
    for t in range(T):
        g_x = xproj[t * B:(t + 1) * B, :]                          # (B, 4G)

        # (3) bf16 operands -> single-pass MXU; f32 accumulate.
        rec = jnp.dot(h.astype(jnp.bfloat16), whh,
                      preferred_element_type=jnp.float32)          # (B, 4G)
        gates = g_x + rec

        # (2) one transcendental pass for all four gates:
        #     sigmoid(z) = 0.5*tanh(z/2) + 0.5 (0.5 scale folded into weights).
        t_all = jnp.tanh(gates)
        i_g = 0.5 * t_all[:, 0 * G:1 * G] + 0.5
        f_g = 0.5 * t_all[:, 1 * G:2 * G] + 0.5
        g_g = t_all[:, 2 * G:3 * G]
        o_g = 0.5 * t_all[:, 3 * G:4 * G] + 0.5

        c_new = f_g * c + i_g * g_g
        h_new = o_g * jnp.tanh(c_new)

        # (5) packed-sequence semantics via vselect: freeze state, zero output.
        m_t = m_all[t * B:(t + 1) * B, :]                          # (B, G) bool
        h = jnp.where(m_t, h_new, h)
        c = jnp.where(m_t, c_new, c)
        out_chunks.append(jnp.where(m_t, h_new, 0.0))

    # (4) single lane-dense store of all timesteps; no per-step masked stores.
    out_ref[...] = jnp.concatenate(out_chunks, axis=-1).astype(out_ref.dtype)
    hT_ref[...] = h.astype(hT_ref.dtype)


def bilstm_fused_pallas(x_flat, mask_flat, w_ih_blk, w_hh_blk, bias_blk,
                        T, Bp, hidden):
    """x_flat: (T*Bp, 2D).  Returns ((Bp, T*2H), (Bp, 2H))."""
    G = 2 * hidden
    out_flat, h_T = pl.pallas_call(
        _bilstm_fused_kernel,
        out_shape=(jax.ShapeDtypeStruct((Bp, T * G), jnp.float32),
                   jax.ShapeDtypeStruct((Bp, G), jnp.float32)),
        in_specs=[pl.BlockSpec(memory_space=pltpu.MemorySpace.VMEM)] * 5,
        out_specs=(pl.BlockSpec(memory_space=pltpu.MemorySpace.VMEM),
                   pl.BlockSpec(memory_space=pltpu.MemorySpace.VMEM)),
        # Footprint here is < 1 MiB; explicit limit documents the v7x (64 MiB
        # physical VMEM) guard.  Tile the time axis with a grid once this grows.
        compiler_params=pltpu.CompilerParams(vmem_limit_bytes=32 * 1024 * 1024),
    )(x_flat, mask_flat, w_ih_blk, w_hh_blk, bias_blk)
    return out_flat, h_T


# ----------------------------------------------------------------------------
# Weight fusion: block-diagonal over directions, gate-major columns
# [i_f, i_b, f_f, f_b, g_f, g_b, o_f, o_b]; i/f/o columns pre-scaled by 0.5
# so that sigmoid(z) = 0.5*tanh(z_scaled) + 0.5 inside the kernel.
# ----------------------------------------------------------------------------
_GATE_SCALE = (0.5, 0.5, 1.0, 0.5)          # i, f, g(tanh), o


def _fuse_weights(w_f, w_b, dtype=jnp.float32):
    """w_f, w_b: (4H, Din) PyTorch layout (rows [i|f|g|o]). -> (2*Din, 8H)."""
    H4, Din = w_f.shape
    H = H4 // 4
    wfT = w_f.T.astype(jnp.float32)          # (Din, 4H), columns [i|f|g|o]
    wbT = w_b.T.astype(jnp.float32)
    zf = jnp.zeros((Din, H), jnp.float32)
    cols = []
    for g, s in enumerate(_GATE_SCALE):
        cf = s * wfT[:, g * H:(g + 1) * H]
        cb = s * wbT[:, g * H:(g + 1) * H]
        cols.append(jnp.concatenate([cf, zf], axis=0))   # feeds forward gate
        cols.append(jnp.concatenate([zf, cb], axis=0))   # feeds backward gate
    return jnp.concatenate(cols, axis=1).astype(dtype)   # (2*Din, 8H)


def _fuse_bias(b_f, b_b):
    H = b_f.shape[0] // 4
    parts = []
    for g, s in enumerate(_GATE_SCALE):
        parts.append(s * b_f[g * H:(g + 1) * H])
        parts.append(s * b_b[g * H:(g + 1) * H])
    return jnp.concatenate(parts).astype(jnp.float32)    # (8H,)


# ----------------------------------------------------------------------------
# Wrapper (plain JAX): batch padding, per-sequence reversal for the backward
# direction, direction concat, PyTorch-matching return values.
# ----------------------------------------------------------------------------
def _reverse_padded(x_btX, lengths):
    """x[b, t] -> x[b, lengths[b]-1-t] for t < lengths[b], else 0."""
    B, T = x_btX.shape[0], x_btX.shape[1]
    t_idx = jnp.arange(T)[None, :]
    rev = lengths[:, None] - 1 - t_idx
    valid = rev >= 0
    rev_c = jnp.clip(rev, 0, T - 1)
    gathered = jnp.take_along_axis(x_btX, rev_c[:, :, None], axis=1)
    return jnp.where(valid[:, :, None], gathered, 0.0)


def lstm_encoder_forward(x_btd, lengths, params):
    """Mirrors LSTMEncoder.forward(inputs, lengths, need_sort=False).

    x_btd: (B, T, D) float32, lengths: (B,) int32 (sorted descending).
    Returns (outputs (B, T, 2H) zero-padded, ht_flat (B, 2H)).
    """
    B0, T, D = x_btd.shape
    H = params["w_hh_f"].shape[1]
    G = 2 * H

    # Pad batch to a full 8-sublane f32 tile; padded rows get length 0 so
    # their state stays zero and their outputs are dropped below.
    Bp = -(-B0 // 8) * 8
    pad = Bp - B0
    x_p = jnp.pad(x_btd.astype(jnp.float32), ((0, pad), (0, 0), (0, 0)))
    len_p = jnp.pad(lengths.astype(jnp.int32), (0, pad))

    # Backward-direction input: per-sequence reversal (packed semantics).
    x_rev = _reverse_padded(x_p, len_p)
    x_cat_tm = jnp.transpose(jnp.concatenate([x_p, x_rev], axis=-1),
                             (1, 0, 2))                       # (T, Bp, 2D)
    x_flat = x_cat_tm.reshape(T * Bp, 2 * D)

    # Validity mask pre-broadcast to the state width (vselect-ready in-kernel).
    t_idx = jnp.arange(T, dtype=jnp.int32)[:, None]
    valid = (t_idx < len_p[None, :]).astype(jnp.float32)      # (T, Bp)
    mask_flat = jnp.broadcast_to(valid.reshape(T * Bp, 1), (T * Bp, G))

    w_ih_blk = _fuse_weights(params["w_ih_f"], params["w_ih_b"])          # f32
    w_hh_blk = _fuse_weights(params["w_hh_f"], params["w_hh_b"],
                             dtype=jnp.bfloat16)                          # bf16
    b_blk = _fuse_bias(params["b_ih_f"] + params["b_hh_f"],
                       params["b_ih_b"] + params["b_hh_b"]).reshape(1, -1)

    out_flat, h_fin = bilstm_fused_pallas(x_flat, mask_flat,
                                          w_ih_blk, w_hh_blk, b_blk,
                                          T, Bp, H)

    out_bt = out_flat.reshape(Bp, T, G)                       # (Bp, T, 2H)
    out_f = out_bt[..., :H]
    out_b = _reverse_padded(out_bt[..., H:], len_p)           # un-reverse bwd
    outputs = jnp.concatenate([out_f, out_b], axis=-1)[:B0]   # (B, T, 2H)

    # ht: (num_dirs, B, H).permute(1,0,2).view(B, -1) == [h_f | h_b] per row,
    # which is exactly the fused carry layout.
    ht_flat = h_fin[:B0]                                      # (B, 2H)
    return outputs, ht_flat


# ----------------------------------------------------------------------------
# Pure-JAX f32 reference (independent math path, per-direction lax.scan).
# ----------------------------------------------------------------------------
def _lstm_direction_ref(x_tm, lengths, w_ih_T, w_hh_T, bias):
    T, B, D = x_tm.shape
    H = w_hh_T.shape[0]

    def step(carry, inp):
        h, c = carry
        xt, t = inp
        gates = (jnp.dot(xt, w_ih_T, precision=lax.Precision.HIGHEST)
                 + jnp.dot(h, w_hh_T, precision=lax.Precision.HIGHEST)
                 + bias)
        i_g = jax.nn.sigmoid(gates[:, 0 * H:1 * H])
        f_g = jax.nn.sigmoid(gates[:, 1 * H:2 * H])
        g_g = jnp.tanh(gates[:, 2 * H:3 * H])
        o_g = jax.nn.sigmoid(gates[:, 3 * H:4 * H])
        c_new = f_g * c + i_g * g_g
        h_new = o_g * jnp.tanh(c_new)
        valid = (lengths > t)[:, None]
        h = jnp.where(valid, h_new, h)
        c = jnp.where(valid, c_new, c)
        return (h, c), jnp.where(valid, h_new, 0.0)

    init = (jnp.zeros((B, H), jnp.float32), jnp.zeros((B, H), jnp.float32))
    (h, _), outs = lax.scan(step, init, (x_tm, jnp.arange(T)))
    return outs, h


def lstm_encoder_forward_ref(x_btd, lengths, params):
    x_tm = jnp.transpose(x_btd, (1, 0, 2))
    out_f_tm, h_f = _lstm_direction_ref(
        x_tm, lengths, params["w_ih_f"].T, params["w_hh_f"].T,
        params["b_ih_f"] + params["b_hh_f"])
    out_f = jnp.transpose(out_f_tm, (1, 0, 2))
    x_rev_tm = jnp.transpose(_reverse_padded(x_btd, lengths), (1, 0, 2))
    out_r_tm, h_b = _lstm_direction_ref(
        x_rev_tm, lengths, params["w_ih_b"].T, params["w_hh_b"].T,
        params["b_ih_b"] + params["b_hh_b"])
    out_b = _reverse_padded(jnp.transpose(out_r_tm, (1, 0, 2)), lengths)
    return (jnp.concatenate([out_f, out_b], -1),
            jnp.concatenate([h_f, h_b], -1))


# ----------------------------------------------------------------------------
# Deterministic parameter init (PyTorch nn.LSTM: U(-1/sqrt(H), 1/sqrt(H))).
# ----------------------------------------------------------------------------
def init_lstm_params(key, input_size, hidden_size):
    k = 1.0 / np.sqrt(hidden_size)
    names = ["w_ih_f", "w_hh_f", "b_ih_f", "b_hh_f",
             "w_ih_b", "w_hh_b", "b_ih_b", "b_hh_b"]
    shapes = [(4 * hidden_size, input_size), (4 * hidden_size, hidden_size),
              (4 * hidden_size,), (4 * hidden_size,)] * 2
    keys = jax.random.split(key, len(names))
    return {n: jax.random.uniform(kk, s, jnp.float32, -k, k)
            for n, s, kk in zip(names, shapes, keys)}


if __name__ == "__main__":
    B, T, D, H = 4, 8, 16, 32

    key = jax.random.PRNGKey(0)
    k_x, k_p = jax.random.split(key)
    x = jax.random.normal(k_x, (B, T, D), jnp.float32)
    # sorted-descending lengths (module with need_sort=False assumes this)
    lengths = jnp.array([8, 6, 5, 3], dtype=jnp.int32)
    params = init_lstm_params(k_p, D, H)

    outputs, ht_flat = jax.jit(lstm_encoder_forward)(x, lengths, params)
    outputs = jax.block_until_ready(outputs)
    ht_flat = jax.block_until_ready(ht_flat)

    # Correctness check against the independent pure-f32 JAX reference.
    # Tolerance is 2e-2 because the kernel's recurrent matmul uses bf16 MXU
    # operands (per perf review); observed error is ~1e-3.
    out_ref, ht_ref = lstm_encoder_forward_ref(x, lengths, params)
    np.testing.assert_allclose(np.asarray(outputs), np.asarray(out_ref),
                               rtol=2e-2, atol=2e-2)
    np.testing.assert_allclose(np.asarray(ht_flat), np.asarray(ht_ref),
                               rtol=2e-2, atol=2e-2)

    assert outputs.shape == (B, T, 2 * H) and ht_flat.shape == (B, 2 * H)
    print("KERNEL_OK")
</pallas_src>

<mosaic_0001>
module attributes {stable_mosaic.version = 11 : i64} {
  func.func @_bilstm_fused_kernel(%arg0: memref<64x32xf32, #tpu.memory_space<vmem>>, %arg1: memref<64x64xf32, #tpu.memory_space<vmem>>, %arg2: memref<32x256xf32, #tpu.memory_space<vmem>>, %arg3: memref<64x256xbf16, #tpu.memory_space<vmem>>, %arg4: memref<1x256xf32, #tpu.memory_space<vmem>>, %arg5: memref<8x512xf32, #tpu.memory_space<vmem>>, %arg6: memref<8x64xf32, #tpu.memory_space<vmem>>) attributes {dimension_semantics = [], scalar_prefetch = 0 : i64, scratch_operands = 0 : i64, tpu.core_type = #tpu.core_type<tc>} {
    %c0 = arith.constant 0 : index
    %c0_0 = arith.constant 0 : index
    %0 = vector.load %arg0[%c0, %c0_0] : memref<64x32xf32, #tpu.memory_space<vmem>>, vector<64x32xf32>
    %c0_1 = arith.constant 0 : index
    %c0_2 = arith.constant 0 : index
    %1 = vector.load %arg2[%c0_1, %c0_2] : memref<32x256xf32, #tpu.memory_space<vmem>>, vector<32x256xf32>
    %cst = arith.constant dense<0.000000e+00> : vector<64x256xf32>
    %2 = tpu.matmul %0, %1, %cst {dimension_numbers = #tpu.dot_dimension_numbers<[1], [0], [0], [1], [0, 0, 1, 1], [], []>} : vector<64x32xf32>, vector<32x256xf32>, vector<64x256xf32> -> vector<64x256xf32>
    %c0_3 = arith.constant 0 : index
    %c0_4 = arith.constant 0 : index
    %3 = vector.load %arg4[%c0_3, %c0_4] : memref<1x256xf32, #tpu.memory_space<vmem>>, vector<1x256xf32>
    %4 = vector.broadcast %3 : vector<1x256xf32> to vector<64x256xf32>
    %5 = arith.addf %2, %4 : vector<64x256xf32>
    %c0_5 = arith.constant 0 : index
    %c0_6 = arith.constant 0 : index
    %6 = vector.load %arg3[%c0_5, %c0_6] : memref<64x256xbf16, #tpu.memory_space<vmem>>, vector<64x256xbf16>
    %c0_7 = arith.constant 0 : index
    %c0_8 = arith.constant 0 : index
    %7 = vector.load %arg1[%c0_7, %c0_8] : memref<64x64xf32, #tpu.memory_space<vmem>>, vector<64x64xf32>
    %cst_9 = arith.constant 0.000000e+00 : f32
    %8 = vector.broadcast %cst_9 : f32 to vector<64x64xf32>
    %9 = arith.cmpf one, %7, %8 : vector<64x64xf32>
    %cst_10 = arith.constant 0.000000e+00 : f32
    %10 = vector.broadcast %cst_10 : f32 to vector<8x64xf32>
    %cst_11 = arith.constant 0.000000e+00 : f32
    %11 = vector.broadcast %cst_11 : f32 to vector<8x64xf32>
    %12 = vector.extract_strided_slice %5 {offsets = [0, 0], sizes = [8, 256], strides = [1, 1]} : vector<64x256xf32> to vector<8x256xf32>
    %13 = arith.truncf %10 : vector<8x64xf32> to vector<8x64xbf16>
    %cst_12 = arith.constant dense<0.000000e+00> : vector<8x256xf32>
    %14 = tpu.matmul %13, %6, %cst_12 {dimension_numbers = #tpu.dot_dimension_numbers<[1], [0], [0], [1], [0, 0, 1, 1], [], []>} : vector<8x64xbf16>, vector<64x256xbf16>, vector<8x256xf32> -> vector<8x256xf32>
    %15 = arith.addf %12, %14 : vector<8x256xf32>
    %16 = math.tanh %15 : vector<8x256xf32>
    %17 = vector.extract_strided_slice %16 {offsets = [0, 0], sizes = [8, 64], strides = [1, 1]} : vector<8x256xf32> to vector<8x64xf32>
    %cst_13 = arith.constant 5.000000e-01 : f32
    %18 = vector.broadcast %cst_13 : f32 to vector<8x64xf32>
    %19 = arith.mulf %18, %17 : vector<8x64xf32>
    %cst_14 = arith.constant 5.000000e-01 : f32
    %20 = vector.broadcast %cst_14 : f32 to vector<8x64xf32>
    %21 = arith.addf %19, %20 : vector<8x64xf32>
    %22 = vector.extract_strided_slice %16 {offsets = [0, 64], sizes = [8, 64], strides = [1, 1]} : vector<8x256xf32> to vector<8x64xf32>
    %cst_15 = arith.constant 5.000000e-01 : f32
    %23 = vector.broadcast %cst_15 : f32 to vector<8x64xf32>
    %24 = arith.mulf %23, %22 : vector<8x64xf32>
    %cst_16 = arith.constant 5.000000e-01 : f32
    %25 = vector.broadcast %cst_16 : f32 to vector<8x64xf32>
    %26 = arith.addf %24, %25 : vector<8x64xf32>
    %27 = vector.extract_strided_slice %16 {offsets = [0, 128], sizes = [8, 64], strides = [1, 1]} : vector<8x256xf32> to vector<8x64xf32>
    %28 = vector.extract_strided_slice %16 {offsets = [0, 192], sizes = [8, 64], strides = [1, 1]} : vector<8x256xf32> to vector<8x64xf32>
    %cst_17 = arith.constant 5.000000e-01 : f32
    %29 = vector.broadcast %cst_17 : f32 to vector<8x64xf32>
    %30 = arith.mulf %29, %28 : vector<8x64xf32>
    %cst_18 = arith.constant 5.000000e-01 : f32
    %31 = vector.broadcast %cst_18 : f32 to vector<8x64xf32>
    %32 = arith.addf %30, %31 : vector<8x64xf32>
    %33 = arith.mulf %26, %11 : vector<8x64xf32>
    %34 = arith.mulf %21, %27 : vector<8x64xf32>
    %35 = arith.addf %33, %34 : vector<8x64xf32>
    %36 = math.tanh %35 : vector<8x64xf32>
    %37 = arith.mulf %32, %36 : vector<8x64xf32>
    %38 = vector.extract_strided_slice %9 {offsets = [0, 0], sizes = [8, 64], strides = [1, 1]} : vector<64x64xi1> to vector<8x64xi1>
    %39 = arith.select %38, %37, %10 : vector<8x64xi1>, vector<8x64xf32>
    %40 = arith.select %38, %35, %11 : vector<8x64xi1>, vector<8x64xf32>
    %cst_19 = arith.constant 0.000000e+00 : f32
    %41 = vector.broadcast %cst_19 : f32 to vector<8x64xf32>
    %42 = arith.select %38, %37, %41 : vector<8x64xi1>, vector<8x64xf32>
    %43 = vector.extract_strided_slice %5 {offsets = [8, 0], sizes = [8, 256], strides = [1, 1]} : vector<64x256xf32> to vector<8x256xf32>
    %44 = arith.truncf %39 : vector<8x64xf32> to vector<8x64xbf16>
    %cst_20 = arith.constant dense<0.000000e+00> : vector<8x256xf32>
    %45 = tpu.matmul %44, %6, %cst_20 {dimension_numbers = #tpu.dot_dimension_numbers<[1], [0], [0], [1], [0, 0, 1, 1], [], []>} : vector<8x64xbf16>, vector<64x256xbf16>, vector<8x256xf32> -> vector<8x256xf32>
    %46 = arith.addf %43, %45 : vector<8x256xf32>
    %47 = math.tanh %46 : vector<8x256xf32>
    %48 = vector.extract_strided_slice %47 {offsets = [0, 0], sizes = [8, 64], strides = [1, 1]} : vector<8x256xf32> to vector<8x64xf32>
    %cst_21 = arith.constant 5.000000e-01 : f32
    %49 = vector.broadcast %cst_21 : f32 to vector<8x64xf32>
    %50 = arith.mulf %49, %48 : vector<8x64xf32>
    %cst_22 = arith.constant 5.000000e-01 : f32
    %51 = vector.broadcast %cst_22 : f32 to vector<8x64xf32>
    %52 = arith.addf %50, %51 : vector<8x64xf32>
    %53 = vector.extract_strided_slice %47 {offsets = [0, 64], sizes = [8, 64], strides = [1, 1]} : vector<8x256xf32> to vector<8x64xf32>
    %cst_23 = arith.constant 5.000000e-01 : f32
    %54 = vector.broadcast %cst_23 : f32 to vector<8x64xf32>
    %55 = arith.mulf %54, %53 : vector<8x64xf32>
    %cst_24 = arith.constant 5.000000e-01 : f32
    %56 = vector.broadcast %cst_24 : f32 to vector<8x64xf32>
    %57 = arith.addf %55, %56 : vector<8x64xf32>
    %58 = vector.extract_strided_slice %47 {offsets = [0, 128], sizes = [8, 64], strides = [1, 1]} : vector<8x256xf32> to vector<8x64xf32>
    %59 = vector.extract_strided_slice %47 {offsets = [0, 192], sizes = [8, 64], strides = [1, 1]} : vector<8x256xf32> to vector<8x64xf32>
    %cst_25 = arith.constant 5.000000e-01 : f32
    %60 = vector.broadcast %cst_25 : f32 to vector<8x64xf32>
    %61 = arith.mulf %60, %59 : vector<8x64xf32>
    %cst_26 = arith.constant 5.000000e-01 : f32
    %62 = vector.broadcast %cst_26 : f32 to vector<8x64xf32>
    %63 = arith.addf %61, %62 : vector<8x64xf32>
    %64 = arith.mulf %57, %40 : vector<8x64xf32>
    %65 = arith.mulf %52, %58 : vector<8x64xf32>
    %66 = arith.addf %64, %65 : vector<8x64xf32>
    %67 = math.tanh %66 : vector<8x64xf32>
    %68 = arith.mulf %63, %67 : vector<8x64xf32>
    %69 = vector.extract_strided_slice %9 {offsets = [8, 0], sizes = [8, 64], strides = [1, 1]} : vector<64x64xi1> to vector<8x64xi1>
    %70 = arith.select %69, %68, %39 : vector<8x64xi1>, vector<8x64xf32>
    %71 = arith.select %69, %66, %40 : vector<8x64xi1>, vector<8x64xf32>
    %cst_27 = arith.constant 0.000000e+00 : f32
    %72 = vector.broadcast %cst_27 : f32 to vector<8x64xf32>
    %73 = arith.select %69, %68, %72 : vector<8x64xi1>, vector<8x64xf32>
    %74 = vector.extract_strided_slice %5 {offsets = [16, 0], sizes = [8, 256], strides = [1, 1]} : vector<64x256xf32> to vector<8x256xf32>
    %75 = arith.truncf %70 : vector<8x64xf32> to vector<8x64xbf16>
    %cst_28 = arith.constant dense<0.000000e+00> : vector<8x256xf32>
    %76 = tpu.matmul %75, %6, %cst_28 {dimension_numbers = #tpu.dot_dimension_numbers<[1], [0], [0], [1], [0, 0, 1, 1], [], []>} : vector<8x64xbf16>, vector<64x256xbf16>, vector<8x256xf32> -> vector<8x256xf32>
    %77 = arith.addf %74, %76 : vector<8x256xf32>
    %78 = math.tanh %77 : vector<8x256xf32>
    %79 = vector.extract_strided_slice %78 {offsets = [0, 0], sizes = [8, 64], strides = [1, 1]} : vector<8x256xf32> to vector<8x64xf32>
    %cst_29 = arith.constant 5.000000e-01 : f32
    %80 = vector.broadcast %cst_29 : f32 to vector<8x64xf32>
    %81 = arith.mulf %80, %79 : vector<8x64xf32>
    %cst_30 = arith.constant 5.000000e-01 : f32
    %82 = vector.broadcast %cst_30 : f32 to vector<8x64xf32>
    %83 = arith.addf %81, %82 : vector<8x64xf32>
    %84 = vector.extract_strided_slice %78 {offsets = [0, 64], sizes = [8, 64], strides = [1, 1]} : vector<8x256xf32> to vector<8x64xf32>
    %cst_31 = arith.constant 5.000000e-01 : f32
    %85 = vector.broadcast %cst_31 : f32 to vector<8x64xf32>
    %86 = arith.mulf %85, %84 : vector<8x64xf32>
    %cst_32 = arith.constant 5.000000e-01 : f32
    %87 = vector.broadcast %cst_32 : f32 to vector<8x64xf32>
    %88 = arith.addf %86, %87 : vector<8x64xf32>
    %89 = vector.extract_strided_slice %78 {offsets = [0, 128], sizes = [8, 64], strides = [1, 1]} : vector<8x256xf32> to vector<8x64xf32>
    %90 = vector.extract_strided_slice %78 {offsets = [0, 192], sizes = [8, 64], strides = [1, 1]} : vector<8x256xf32> to vector<8x64xf32>
    %cst_33 = arith.constant 5.000000e-01 : f32
    %91 = vector.broadcast %cst_33 : f32 to vector<8x64xf32>
    %92 = arith.mulf %91, %90 : vector<8x64xf32>
    %cst_34 = arith.constant 5.000000e-01 : f32
    %93 = vector.broadcast %cst_34 : f32 to vector<8x64xf32>
    %94 = arith.addf %92, %93 : vector<8x64xf32>
    %95 = arith.mulf %88, %71 : vector<8x64xf32>
    %96 = arith.mulf %83, %89 : vector<8x64xf32>
    %97 = arith.addf %95, %96 : vector<8x64xf32>
    %98 = math.tanh %97 : vector<8x64xf32>
    %99 = arith.mulf %94, %98 : vector<8x64xf32>
    %100 = vector.extract_strided_slice %9 {offsets = [16, 0], sizes = [8, 64], strides = [1, 1]} : vector<64x64xi1> to vector<8x64xi1>
    %101 = arith.select %100, %99, %70 : vector<8x64xi1>, vector<8x64xf32>
    %102 = arith.select %100, %97, %71 : vector<8x64xi1>, vector<8x64xf32>
    %cst_35 = arith.constant 0.000000e+00 : f32
    %103 = vector.broadcast %cst_35 : f32 to vector<8x64xf32>
    %104 = arith.select %100, %99, %103 : vector<8x64xi1>, vector<8x64xf32>
    %105 = vector.extract_strided_slice %5 {offsets = [24, 0], sizes = [8, 256], strides = [1, 1]} : vector<64x256xf32> to vector<8x256xf32>
    %106 = arith.truncf %101 : vector<8x64xf32> to vector<8x64xbf16>
    %cst_36 = arith.constant dense<0.000000e+00> : vector<8x256xf32>
    %107 = tpu.matmul %106, %6, %cst_36 {dimension_numbers = #tpu.dot_dimension_numbers<[1], [0], [0], [1], [0, 0, 1, 1], [], []>} : vector<8x64xbf16>, vector<64x256xbf16>, vector<8x256xf32> -> vector<8x256xf32>
    %108 = arith.addf %105, %107 : vector<8x256xf32>
    %109 = math.tanh %108 : vector<8x256xf32>
    %110 = vector.extract_strided_slice %109 {offsets = [0, 0], sizes = [8, 64], strides = [1, 1]} : vector<8x256xf32> to vector<8x64xf32>
    %cst_37 = arith.constant 5.000000e-01 : f32
    %111 = vector.broadcast %cst_37 : f32 to vector<8x64xf32>
    %112 = arith.mulf %111, %110 : vector<8x64xf32>
    %cst_38 = arith.constant 5.000000e-01 : f32
    %113 = vector.broadcast %cst_38 : f32 to vector<8x64xf32>
    %114 = arith.addf %112, %113 : vector<8x64xf32>
    %115 = vector.extract_strided_slice %109 {offsets = [0, 64], sizes = [8, 64], strides = [1, 1]} : vector<8x256xf32> to vector<8x64xf32>
    %cst_39 = arith.constant 5.000000e-01 : f32
    %116 = vector.broadcast %cst_39 : f32 to vector<8x64xf32>
    %117 = arith.mulf %116, %115 : vector<8x64xf32>
    %cst_40 = arith.constant 5.000000e-01 : f32
    %118 = vector.broadcast %cst_40 : f32 to vector<8x64xf32>
    %119 = arith.addf %117, %118 : vector<8x64xf32>
    %120 = vector.extract_strided_slice %109 {offsets = [0, 128], sizes = [8, 64], strides = [1, 1]} : vector<8x256xf32> to vector<8x64xf32>
    %121 = vector.extract_strided_slice %109 {offsets = [0, 192], sizes = [8, 64], strides = [1, 1]} : vector<8x256xf32> to vector<8x64xf32>
    %cst_41 = arith.constant 5.000000e-01 : f32
    %122 = vector.broadcast %cst_41 : f32 to vector<8x64xf32>
    %123 = arith.mulf %122, %121 : vector<8x64xf32>
    %cst_42 = arith.constant 5.000000e-01 : f32
    %124 = vector.broadcast %cst_42 : f32 to vector<8x64xf32>
    %125 = arith.addf %123, %124 : vector<8x64xf32>
    %126 = arith.mulf %119, %102 : vector<8x64xf32>
    %127 = arith.mulf %114, %120 : vector<8x64xf32>
    %128 = arith.addf %126, %127 : vector<8x64xf32>
    %129 = math.tanh %128 : vector<8x64xf32>
    %130 = arith.mulf %125, %129 : vector<8x64xf32>
    %131 = vector.extract_strided_slice %9 {offsets = [24, 0], sizes = [8, 64], strides = [1, 1]} : vector<64x64xi1> to vector<8x64xi1>
    %132 = arith.select %131, %130, %101 : vector<8x64xi1>, vector<8x64xf32>
    %133 = arith.select %131, %128, %102 : vector<8x64xi1>, vector<8x64xf32>
    %cst_43 = arith.constant 0.000000e+00 : f32
    %134 = vector.broadcast %cst_43 : f32 to vector<8x64xf32>
    %135 = arith.select %131, %130, %134 : vector<8x64xi1>, vector<8x64xf32>
    %136 = vector.extract_strided_slice %5 {offsets = [32, 0], sizes = [8, 256], strides = [1, 1]} : vector<64x256xf32> to vector<8x256xf32>
    %137 = arith.truncf %132 : vector<8x64xf32> to vector<8x64xbf16>
    %cst_44 = arith.constant dense<0.000000e+00> : vector<8x256xf32>
    %138 = tpu.matmul %137, %6, %cst_44 {dimension_numbers = #tpu.dot_dimension_numbers<[1], [0], [0], [1], [0, 0, 1, 1], [], []>} : vector<8x64xbf16>, vector<64x256xbf16>, vector<8x256xf32> -> vector<8x256xf32>
    %139 = arith.addf %136, %138 : vector<8x256xf32>
    %140 = math.tanh %139 : vector<8x256xf32>
    %141 = vector.extract_strided_slice %140 {offsets = [0, 0], sizes = [8, 64], strides = [1, 1]} : vector<8x256xf32> to vector<8x64xf32>
    %cst_45 = arith.constant 5.000000e-01 : f32
    %142 = vector.broadcast %cst_45 : f32 to vector<8x64xf32>
    %143 = arith.mulf %142, %141 : vector<8x64xf32>
    %cst_46 = arith.constant 5.000000e-01 : f32
    %144 = vector.broadcast %cst_46 : f32 to vector<8x64xf32>
    %145 = arith.addf %143, %144 : vector<8x64xf32>
    %146 = vector.extract_strided_slice %140 {offsets = [0, 64], sizes = [8, 64], strides = [1, 1]} : vector<8x256xf32> to vector<8x64xf32>
    %cst_47 = arith.constant 5.000000e-01 : f32
    %147 = vector.broadcast %cst_47 : f32 to vector<8x64xf32>
    %148 = arith.mulf %147, %146 : vector<8x64xf32>
    %cst_48 = arith.constant 5.000000e-01 : f32
    %149 = vector.broadcast %cst_48 : f32 to vector<8x64xf32>
    %150 = arith.addf %148, %149 : vector<8x64xf32>
    %151 = vector.extract_strided_slice %140 {offsets = [0, 128], sizes = [8, 64], strides = [1, 1]} : vector<8x256xf32> to vector<8x64xf32>
    %152 = vector.extract_strided_slice %140 {offsets = [0, 192], sizes = [8, 64], strides = [1, 1]} : vector<8x256xf32> to vector<8x64xf32>
    %cst_49 = arith.constant 5.000000e-01 : f32
    %153 = vector.broadcast %cst_49 : f32 to vector<8x64xf32>
    %154 = arith.mulf %153, %152 : vector<8x64xf32>
    %cst_50 = arith.constant 5.000000e-01 : f32
    %155 = vector.broadcast %cst_50 : f32 to vector<8x64xf32>
    %156 = arith.addf %154, %155 : vector<8x64xf32>
    %157 = arith.mulf %150, %133 : vector<8x64xf32>
    %158 = arith.mulf %145, %151 : vector<8x64xf32>
    %159 = arith.addf %157, %158 : vector<8x64xf32>
    %160 = math.tanh %159 : vector<8x64xf32>
    %161 = arith.mulf %156, %160 : vector<8x64xf32>
    %162 = vector.extract_strided_slice %9 {offsets = [32, 0], sizes = [8, 64], strides = [1, 1]} : vector<64x64xi1> to vector<8x64xi1>
    %163 = arith.select %162, %161, %132 : vector<8x64xi1>, vector<8x64xf32>
    %164 = arith.select %162, %159, %133 : vector<8x64xi1>, vector<8x64xf32>
    %cst_51 = arith.constant 0.000000e+00 : f32
    %165 = vector.broadcast %cst_51 : f32 to vector<8x64xf32>
    %166 = arith.select %162, %161, %165 : vector<8x64xi1>, vector<8x64xf32>
    %167 = vector.extract_strided_slice %5 {offsets = [40, 0], sizes = [8, 256], strides = [1, 1]} : vector<64x256xf32> to vector<8x256xf32>
    %168 = arith.truncf %163 : vector<8x64xf32> to vector<8x64xbf16>
    %cst_52 = arith.constant dense<0.000000e+00> : vector<8x256xf32>
    %169 = tpu.matmul %168, %6, %cst_52 {dimension_numbers = #tpu.dot_dimension_numbers<[1], [0], [0], [1], [0, 0, 1, 1], [], []>} : vector<8x64xbf16>, vector<64x256xbf16>, vector<8x256xf32> -> vector<8x256xf32>
    %170 = arith.addf %167, %169 : vector<8x256xf32>
    %171 = math.tanh %170 : vector<8x256xf32>
    %172 = vector.extract_strided_slice %171 {offsets = [0, 0], sizes = [8, 64], strides = [1, 1]} : vector<8x256xf32> to vector<8x64xf32>
    %cst_53 = arith.constant 5.000000e-01 : f32
    %173 = vector.broadcast %cst_53 : f32 to vector<8x64xf32>
    %174 = arith.mulf %173, %172 : vector<8x64xf32>
    %cst_54 = arith.constant 5.000000e-01 : f32
    %175 = vector.broadcast %cst_54 : f32 to vector<8x64xf32>
    %176 = arith.addf %174, %175 : vector<8x64xf32>
    %177 = vector.extract_strided_slice %171 {offsets = [0, 64], sizes = [8, 64], strides = [1, 1]} : vector<8x256xf32> to vector<8x64xf32>
    %cst_55 = arith.constant 5.000000e-01 : f32
    %178 = vector.broadcast %cst_55 : f32 to vector<8x64xf32>
    %179 = arith.mulf %178, %177 : vector<8x64xf32>
    %cst_56 = arith.constant 5.000000e-01 : f32
    %180 = vector.broadcast %cst_56 : f32 to vector<8x64xf32>
    %181 = arith.addf %179, %180 : vector<8x64xf32>
    %182 = vector.extract_strided_slice %171 {offsets = [0, 128], sizes = [8, 64], strides = [1, 1]} : vector<8x256xf32> to vector<8x64xf32>
    %183 = vector.extract_strided_slice %171 {offsets = [0, 192], sizes = [8, 64], strides = [1, 1]} : vector<8x256xf32> to vector<8x64xf32>
    %cst_57 = arith.constant 5.000000e-01 : f32
    %184 = vector.broadcast %cst_57 : f32 to vector<8x64xf32>
    %185 = arith.mulf %184, %183 : vector<8x64xf32>
    %cst_58 = arith.constant 5.000000e-01 : f32
    %186 = vector.broadcast %cst_58 : f32 to vector<8x64xf32>
    %187 = arith.addf %185, %186 : vector<8x64xf32>
    %188 = arith.mulf %181, %164 : vector<8x64xf32>
    %189 = arith.mulf %176, %182 : vector<8x64xf32>
    %190 = arith.addf %188, %189 : vector<8x64xf32>
    %191 = math.tanh %190 : vector<8x64xf32>
    %192 = arith.mulf %187, %191 : vector<8x64xf32>
    %193 = vector.extract_strided_slice %9 {offsets = [40, 0], sizes = [8, 64], strides = [1, 1]} : vector<64x64xi1> to vector<8x64xi1>
    %194 = arith.select %193, %192, %163 : vector<8x64xi1>, vector<8x64xf32>
    %195 = arith.select %193, %190, %164 : vector<8x64xi1>, vector<8x64xf32>
    %cst_59 = arith.constant 0.000000e+00 : f32
    %196 = vector.broadcast %cst_59 : f32 to vector<8x64xf32>
    %197 = arith.select %193, %192, %196 : vector<8x64xi1>, vector<8x64xf32>
    %198 = vector.extract_strided_slice %5 {offsets = [48, 0], sizes = [8, 256], strides = [1, 1]} : vector<64x256xf32> to vector<8x256xf32>
    %199 = arith.truncf %194 : vector<8x64xf32> to vector<8x64xbf16>
    %cst_60 = arith.constant dense<0.000000e+00> : vector<8x256xf32>
    %200 = tpu.matmul %199, %6, %cst_60 {dimension_numbers = #tpu.dot_dimension_numbers<[1], [0], [0], [1], [0, 0, 1, 1], [], []>} : vector<8x64xbf16>, vector<64x256xbf16>, vector<8x256xf32> -> vector<8x256xf32>
    %201 = arith.addf %198, %200 : vector<8x256xf32>
    %202 = math.tanh %201 : vector<8x256xf32>
    %203 = vector.extract_strided_slice %202 {offsets = [0, 0], sizes = [8, 64], strides = [1, 1]} : vector<8x256xf32> to vector<8x64xf32>
    %cst_61 = arith.constant 5.000000e-01 : f32
    %204 = vector.broadcast %cst_61 : f32 to vector<8x64xf32>
    %205 = arith.mulf %204, %203 : vector<8x64xf32>
    %cst_62 = arith.constant 5.000000e-01 : f32
    %206 = vector.broadcast %cst_62 : f32 to vector<8x64xf32>
    %207 = arith.addf %205, %206 : vector<8x64xf32>
    %208 = vector.extract_strided_slice %202 {offsets = [0, 64], sizes = [8, 64], strides = [1, 1]} : vector<8x256xf32> to vector<8x64xf32>
    %cst_63 = arith.constant 5.000000e-01 : f32
    %209 = vector.broadcast %cst_63 : f32 to vector<8x64xf32>
    %210 = arith.mulf %209, %208 : vector<8x64xf32>
    %cst_64 = arith.constant 5.000000e-01 : f32
    %211 = vector.broadcast %cst_64 : f32 to vector<8x64xf32>
    %212 = arith.addf %210, %211 : vector<8x64xf32>
    %213 = vector.extract_strided_slice %202 {offsets = [0, 128], sizes = [8, 64], strides = [1, 1]} : vector<8x256xf32> to vector<8x64xf32>
    %214 = vector.extract_strided_slice %202 {offsets = [0, 192], sizes = [8, 64], strides = [1, 1]} : vector<8x256xf32> to vector<8x64xf32>
    %cst_65 = arith.constant 5.000000e-01 : f32
    %215 = vector.broadcast %cst_65 : f32 to vector<8x64xf32>
    %216 = arith.mulf %215, %214 : vector<8x64xf32>
    %cst_66 = arith.constant 5.000000e-01 : f32
    %217 = vector.broadcast %cst_66 : f32 to vector<8x64xf32>
    %218 = arith.addf %216, %217 : vector<8x64xf32>
    %219 = arith.mulf %212, %195 : vector<8x64xf32>
    %220 = arith.mulf %207, %213 : vector<8x64xf32>
    %221 = arith.addf %219, %220 : vector<8x64xf32>
    %222 = math.tanh %221 : vector<8x64xf32>
    %223 = arith.mulf %218, %222 : vector<8x64xf32>
    %224 = vector.extract_strided_slice %9 {offsets = [48, 0], sizes = [8, 64], strides = [1, 1]} : vector<64x64xi1> to vector<8x64xi1>
    %225 = arith.select %224, %223, %194 : vector<8x64xi1>, vector<8x64xf32>
    %226 = arith.select %224, %221, %195 : vector<8x64xi1>, vector<8x64xf32>
    %cst_67 = arith.constant 0.000000e+00 : f32
    %227 = vector.broadcast %cst_67 : f32 to vector<8x64xf32>
    %228 = arith.select %224, %223, %227 : vector<8x64xi1>, vector<8x64xf32>
    %229 = vector.extract_strided_slice %5 {offsets = [56, 0], sizes = [8, 256], strides = [1, 1]} : vector<64x256xf32> to vector<8x256xf32>
    %230 = arith.truncf %225 : vector<8x64xf32> to vector<8x64xbf16>
    %cst_68 = arith.constant dense<0.000000e+00> : vector<8x256xf32>
    %231 = tpu.matmul %230, %6, %cst_68 {dimension_numbers = #tpu.dot_dimension_numbers<[1], [0], [0], [1], [0, 0, 1, 1], [], []>} : vector<8x64xbf16>, vector<64x256xbf16>, vector<8x256xf32> -> vector<8x256xf32>
    %232 = arith.addf %229, %231 : vector<8x256xf32>
    %233 = math.tanh %232 : vector<8x256xf32>
    %234 = vector.extract_strided_slice %233 {offsets = [0, 0], sizes = [8, 64], strides = [1, 1]} : vector<8x256xf32> to vector<8x64xf32>
    %cst_69 = arith.constant 5.000000e-01 : f32
    %235 = vector.broadcast %cst_69 : f32 to vector<8x64xf32>
    %236 = arith.mulf %235, %234 : vector<8x64xf32>
    %cst_70 = arith.constant 5.000000e-01 : f32
    %237 = vector.broadcast %cst_70 : f32 to vector<8x64xf32>
    %238 = arith.addf %236, %237 : vector<8x64xf32>
    %239 = vector.extract_strided_slice %233 {offsets = [0, 64], sizes = [8, 64], strides = [1, 1]} : vector<8x256xf32> to vector<8x64xf32>
    %cst_71 = arith.constant 5.000000e-01 : f32
    %240 = vector.broadcast %cst_71 : f32 to vector<8x64xf32>
    %241 = arith.mulf %240, %239 : vector<8x64xf32>
    %cst_72 = arith.constant 5.000000e-01 : f32
    %242 = vector.broadcast %cst_72 : f32 to vector<8x64xf32>
    %243 = arith.addf %241, %242 : vector<8x64xf32>
    %244 = vector.extract_strided_slice %233 {offsets = [0, 128], sizes = [8, 64], strides = [1, 1]} : vector<8x256xf32> to vector<8x64xf32>
    %245 = vector.extract_strided_slice %233 {offsets = [0, 192], sizes = [8, 64], strides = [1, 1]} : vector<8x256xf32> to vector<8x64xf32>
    %cst_73 = arith.constant 5.000000e-01 : f32
    %246 = vector.broadcast %cst_73 : f32 to vector<8x64xf32>
    %247 = arith.mulf %246, %245 : vector<8x64xf32>
    %cst_74 = arith.constant 5.000000e-01 : f32
    %248 = vector.broadcast %cst_74 : f32 to vector<8x64xf32>
    %249 = arith.addf %247, %248 : vector<8x64xf32>
    %250 = arith.mulf %243, %226 : vector<8x64xf32>
    %251 = arith.mulf %238, %244 : vector<8x64xf32>
    %252 = arith.addf %250, %251 : vector<8x64xf32>
    %253 = math.tanh %252 : vector<8x64xf32>
    %254 = arith.mulf %249, %253 : vector<8x64xf32>
    %255 = vector.extract_strided_slice %9 {offsets = [56, 0], sizes = [8, 64], strides = [1, 1]} : vector<64x64xi1> to vector<8x64xi1>
    %256 = arith.select %255, %254, %225 : vector<8x64xi1>, vector<8x64xf32>
    %cst_75 = arith.constant 0.000000e+00 : f32
    %257 = vector.broadcast %cst_75 : f32 to vector<8x64xf32>
    %258 = arith.select %255, %254, %257 : vector<8x64xi1>, vector<8x64xf32>
    %259 = tpu.concatenate %42, %73, %104, %135, %166, %197, %228, %258 in 1 : vector<8x64xf32>, vector<8x64xf32>, vector<8x64xf32>, vector<8x64xf32>, vector<8x64xf32>, vector<8x64xf32>, vector<8x64xf32>, vector<8x64xf32> -> vector<8x512xf32>
    %c0_76 = arith.constant 0 : index
    %c0_77 = arith.constant 0 : index
    %260 = vector.load %arg5[%c0_76, %c0_77] : memref<8x512xf32, #tpu.memory_space<vmem>>, vector<8x512xf32>
    tpu.vector_store %arg5[%c0_76, %c0_77], %259 {strides = array<i32>} : memref<8x512xf32, #tpu.memory_space<vmem>>, vector<8x512xf32>,
    %c0_78 = arith.constant 0 : index
    %c0_79 = arith.constant 0 : index
    %261 = vector.load %arg6[%c0_78, %c0_79] : memref<8x64xf32, #tpu.memory_space<vmem>>, vector<8x64xf32>
    tpu.vector_store %arg6[%c0_78, %c0_79], %256 {strides = array<i32>} : memref<8x64xf32, #tpu.memory_space<vmem>>, vector<8x64xf32>,
    return
  }
}

</mosaic_0001>

<llo_original>
// kernel: lstm_encoder_forward.1
$region0: #{lstm_encoder_forward.1}
  #allocation0 [shape = 'u32[]', space=smem, size = 0x4, offset = 0x4, fixed_abs, tag = 'smem constant byte address 0x4 - core index']
  #allocation1 [shape = 'u32[144,128]{1,0:T(1,128)}', space=vmem, size = 0x12000, scoped, tag = 'internal scratch']
  %s0 = inlined_call_operand.vmem [shape: f32[64,32], index: 0, kind: input, shape index: {}]
  %s1 = inlined_call_operand.vmem [shape: f32[64,64], index: 1, kind: input, shape index: {}]
  %s2 = inlined_call_operand.vmem [shape: f32[32,256], index: 2, kind: input, shape index: {}]
  %s3 = inlined_call_operand.vmem [shape: bf16[64,256], index: 3, kind: input, shape index: {}]
  %s4 = inlined_call_operand.vmem [shape: f32[1,256], index: 4, kind: input, shape index: {}]
  %s5 = inlined_call_operand.vmem [shape: f32[8,512], index: 5, kind: output, shape index: {0}]
  %s6 = inlined_call_operand.vmem [shape: f32[8,64], index: 6, kind: output, shape index: {1}]
  %7 = xla_tuple %s5, %s6
  %s8 = sld [smem:[#allocation0]]
  $region38: #{lstm_encoder_forward.1} parent=0
    _
  %s10 = ssub.s32 1, %s8
  %s11 = scalar_select 0, %s10, %s8
  // Predicated region
  $region2: #{lstm_encoder_forward.1} parent=0 // pred_check
    _
  $region3: #{lstm_encoder_forward.1} parent=0 // pred_check_branch
    %13 = sbr.rel (0) target = $region5
  $region4: #{lstm_encoder_forward.1} parent=0 // pred_region
    _
  $region5: #{lstm_encoder_forward.1} parent=0 // pred_fallthru
    _
  // Predicated region
  $region6: #{lstm_encoder_forward.1} parent=0 // pred_check
    _
  $region7: #{lstm_encoder_forward.1} parent=0 // pred_check_branch
    %15 = sbr.rel (0) target = $region9
  $region8: #{lstm_encoder_forward.1} parent=0 // pred_region
    _
  $region9: #{lstm_encoder_forward.1} parent=0 // pred_fallthru
    _
  // Predicated region
  $region10: #{lstm_encoder_forward.1} parent=0 // pred_check
    _
  $region11: #{lstm_encoder_forward.1} parent=0 // pred_check_branch
    %17 = sbr.rel (0) target = $region13
  $region12: #{lstm_encoder_forward.1} parent=0 // pred_region
    _
  $region13: #{lstm_encoder_forward.1} parent=0 // pred_fallthru
    _
  // Predicated region
  $region14: #{lstm_encoder_forward.1} parent=0 // pred_check
    _
  $region15: #{lstm_encoder_forward.1} parent=0 // pred_check_branch
    %19 = sbr.rel (0) target = $region17
  $region16: #{lstm_encoder_forward.1} parent=0 // pred_region
    _
  $region17: #{lstm_encoder_forward.1} parent=0 // pred_fallthru
    _
  // Predicated region
  $region18: #{lstm_encoder_forward.1} parent=0 // pred_check
    _
  $region19: #{lstm_encoder_forward.1} parent=0 // pred_check_branch
    %21 = sbr.rel (0) target = $region21
  $region20: #{lstm_encoder_forward.1} parent=0 // pred_region
    _
  $region21: #{lstm_encoder_forward.1} parent=0 // pred_fallthru
    _
  %v23 = vld [vmem:[%s0] sm:$0xff]
  %v24 = vld [vmem:[%s0 + $0x8] sm:$0xff]
  %v25 = vld [vmem:[%s0 + $0x10] sm:$0xff]
  %v26 = vld [vmem:[%s0 + $0x18] sm:$0xff]
  %v27 = vld [vmem:[%s0 + $0x20] sm:$0xff]
  %v28 = vld [vmem:[%s0 + $0x28] sm:$0xff]
  %v29 = vld [vmem:[%s0 + $0x30] sm:$0xff]
  %v30 = vld [vmem:[%s0 + $0x38] sm:$0xff]
  %v31 = vld [vmem:[%s2] sm:$0xff]
  %v32 = vld [vmem:[%s2 + $0x8] sm:$0xff]
  %v33 = vld [vmem:[%s2 + $0x10] sm:$0xff]
  %v34 = vld [vmem:[%s2 + $0x18] sm:$0xff]
  %v35 = vld [vmem:[%s2 + $0x20] sm:$0xff]
  %v36 = vld [vmem:[%s2 + $0x28] sm:$0xff]
  %v37 = vld [vmem:[%s2 + $0x30] sm:$0xff]
  %v38 = vld [vmem:[%s2 + $0x38] sm:$0xff]
  %v39 = vld [vmem:[%s4] sm:$0x3]
  %v41 = vlaneseq
  %v42 = vshrl.u32 %v41, 7
  %v43 = vsub.s32 0, %v42
  %v44 = vrot.slane %v39, %v43
  %v45 = vlaneseq
  %v46 = vshrl.u32 %v45, 7
  %v47 = vsub.s32 1, %v46
  %v48 = vrot.slane %v39, %v47
  %vm51 = vcmask 261120
  %v53 = vsel %vm51, %v23, 0
  %v56 = vsel %vm51, %v24, 0
  %v59 = vsel %vm51, %v25, 0
  %v62 = vsel %vm51, %v26, 0
  %v65 = vsel %vm51, %v27, 0
  %v68 = vsel %vm51, %v28, 0
  %v71 = vsel %vm51, %v29, 0
  %v74 = vsel %vm51, %v30, 0
  %76 = vmatprep.subr.mxu0 0.0
  %77 = vmatpush1.msra.mxu0 0.0
  %78 = vmatprep.subr.mxu0 0.0
  %79 = vmatpush1.msra.mxu0 0.0
  %80 = vmatprep.subr.mxu0 0.0
  %81 = vmatpush1.msra.mxu0 0.0
  %82 = vmatprep.subr.mxu0 0.0
  %83 = vmatpush1.msra.mxu0 0.0
  %84 = vmatprep.subr.mxu0 0.0
  %85 = vmatpush1.msra.mxu0 0.0
  %86 = vmatprep.subr.mxu0 0.0
  %87 = vmatpush1.msra.mxu0 0.0
  %88 = vmatprep.subr.mxu0 0.0
  %89 = vmatpush1.msra.mxu0 0.0
  %90 = vmatprep.subr.mxu0 0.0
  %91 = vmatpush1.msra.mxu0 0.0
  %92 = vmatprep.subr.mxu0 0.0
  %93 = vmatpush1.msra.mxu0 0.0
  %94 = vmatprep.subr.mxu0 0.0
  %95 = vmatpush1.msra.mxu0 0.0
  %96 = vmatprep.subr.mxu0 0.0
  %97 = vmatpush1.msra.mxu0 0.0
  %98 = vmatprep.subr.mxu0 0.0
  %99 = vmatpush1.msra.mxu0 0.0
  %100 = vmatprep.subr.mxu0 %v38
  %101 = vmatpush1.msra.mxu0 %v37
  %102 = vmatprep.subr.mxu0 %v36
  %103 = vmatpush1.msra.mxu0 %v35
  %104 = vmatprep.subr.mxu0 %v34
  %105 = vmatpush1.msra.mxu0 %v33
  %106 = vmatprep.subr.mxu0 %v32
  %107 = vmatpush1.msra.mxu0 %v31
  %108 = vmatprep.subr.mxu0 0.0
  %109 = vmatpush2.msra.mxu0 0.0
  %110 = vmatprep.subr.mxu0 0.0
  %111 = vmatpush2.msra.mxu0 0.0
  %112 = vmatprep.subr.mxu0 0.0
  %113 = vmatpush2.msra.mxu0 0.0
  %114 = vmatprep.subr.mxu0 0.0
  %115 = vmatpush2.msra.mxu0 0.0
  %116 = vmatprep.subr.mxu0 0.0
  %117 = vmatpush2.msra.mxu0 0.0
  %118 = vmatprep.subr.mxu0 0.0
  %119 = vmatpush2.msra.mxu0 0.0
  %120 = vmatprep.subr.mxu0 0.0
  %121 = vmatpush2.msra.mxu0 0.0
  %122 = vmatprep.subr.mxu0 0.0
  %123 = vmatpush2.msra.mxu0 0.0
  %124 = vmatprep.subr.mxu0 0.0
  %125 = vmatpush2.msra.mxu0 0.0
  %126 = vmatprep.subr.mxu0 0.0
  %127 = vmatpush2.msra.mxu0 0.0
  %128 = vmatprep.subr.mxu0 0.0
  %129 = vmatpush2.msra.mxu0 0.0
  %130 = vmatprep.subr.mxu0 0.0
  %131 = vmatpush2.msra.mxu0 0.0
  %132 = vmatprep.subr.mxu0 0.0
  %133 = vmatpush2.msra.mxu0 0.0
  %134 = vmatprep.subr.mxu0 0.0
  %135 = vmatpush2.msra.mxu0 0.0
  %136 = vmatprep.subr.mxu0 0.0
  %137 = vmatpush2.msra.mxu0 0.0
  %138 = vmatprep.subr.mxu0 0.0
  %139 = vmatpush2.msra.mxu0 0.0
  %140 = vmatprep.mubr.f32.mxu0 0.0
  %141 = vmatmul.mubr.f32.gmra.mxu0 %v53
  %v142 = vpop.f32.mrf.mxu0
  %v143 = vadd.f32 %v44, %v142
  %v144 = vpop.f32.mrf.mxu0
  %v145 = vadd.f32 %v48, %v144
  %146 = vmatprep.mubr.f32.mxu0 0.0
  %147 = vmatmul.mubr.f32.gmra.mxu0 %v56
  %v148 = vpop.f32.mrf.mxu0
  %v149 = vadd.f32 %v44, %v148
  %v150 = vpop.f32.mrf.mxu0
  %v151 = vadd.f32 %v48, %v150
  %152 = vmatprep.mubr.f32.mxu0 0.0
  %153 = vmatmul.mubr.f32.gmra.mxu0 %v59
  %v154 = vpop.f32.mrf.mxu0
  %v155 = vadd.f32 %v44, %v154
  %v156 = vpop.f32.mrf.mxu0
  %v157 = vadd.f32 %v48, %v156
  %158 = vmatprep.mubr.f32.mxu0 0.0
  %159 = vmatmul.mubr.f32.gmra.mxu0 %v62
  %v160 = vpop.f32.mrf.mxu0
  %v161 = vadd.f32 %v44, %v160
  %v162 = vpop.f32.mrf.mxu0
  %v163 = vadd.f32 %v48, %v162
  %164 = vmatprep.mubr.f32.mxu0 0.0
  %165 = vmatmul.mubr.f32.gmra.mxu0 %v65
  %v166 = vpop.f32.mrf.mxu0
  %v167 = vadd.f32 %v44, %v166
  %v168 = vpop.f32.mrf.mxu0
  %v169 = vadd.f32 %v48, %v168
  %170 = vmatprep.mubr.f32.mxu0 0.0
  %171 = vmatmul.mubr.f32.gmra.mxu0 %v68
  %v172 = vpop.f32.mrf.mxu0
  %v173 = vadd.f32 %v44, %v172
  %v174 = vpop.f32.mrf.mxu0
  %v175 = vadd.f32 %v48, %v174
  %176 = vmatprep.mubr.f32.mxu0 0.0
  %177 = vmatmul.mubr.f32.gmra.mxu0 %v71
  %v178 = vpop.f32.mrf.mxu0
  %v179 = vadd.f32 %v44, %v178
  %v180 = vpop.f32.mrf.mxu0
  %v181 = vadd.f32 %v48, %v180
  %182 = vmatprep.mubr.f32.mxu0 0.0
  %183 = vmatmul.mubr.f32.gmra.mxu0 %v74
  %v184 = vpop.f32.mrf.mxu0
  %v185 = vadd.f32 %v44, %v184
  %v186 = vpop.f32.mrf.mxu0
  %v187 = vadd.f32 %v48, %v186
  %188 = vdwg.mxu0
  %v189 = vld [vmem:[%s3] sm:$0xff]
  %v190 = vld [vmem:[%s3 + $0x8] sm:$0xff]
  %v191 = vld [vmem:[%s3 + $0x10] sm:$0xff]
  %v192 = vld [vmem:[%s3 + $0x18] sm:$0xff]
  %v193 = vld [vmem:[%s3 + $0x20] sm:$0xff]
  %v194 = vld [vmem:[%s3 + $0x28] sm:$0xff]
  %v195 = vld [vmem:[%s3 + $0x30] sm:$0xff]
  %v196 = vld [vmem:[%s3 + $0x38] sm:$0xff]
  %v197 = vld [vmem:[%s1] sm:$0xff]
  %v198 = vld [vmem:[%s1 + $0x8] sm:$0xff]
  %v199 = vld [vmem:[%s1 + $0x10] sm:$0xff]
  %v200 = vld [vmem:[%s1 + $0x18] sm:$0xff]
  %v201 = vld [vmem:[%s1 + $0x20] sm:$0xff]
  %v202 = vld [vmem:[%s1 + $0x28] sm:$0xff]
  %v203 = vld [vmem:[%s1 + $0x30] sm:$0xff]
  %v204 = vld [vmem:[%s1 + $0x38] sm:$0xff]
  %vm205 = vcmp.ne.f32.partialorder %v197, 0.0
  %vm206 = vcmp.ne.f32.partialorder %v198, 0.0
  %vm207 = vcmp.ne.f32.partialorder %v199, 0.0
  %vm208 = vcmp.ne.f32.partialorder %v200, 0.0
  %vm209 = vcmp.ne.f32.partialorder %v201, 0.0
  %vm210 = vcmp.ne.f32.partialorder %v202, 0.0
  %vm211 = vcmp.ne.f32.partialorder %v203, 0.0
  %vm212 = vcmp.ne.f32.partialorder %v204, 0.0
  %v221 = vunpack.c.l.b16 %v189
  %v222 = vunpack.c.h.b16 %v189
  %v223 = vunpack.c.l.b16 %v190
  %v224 = vunpack.c.h.b16 %v190
  %v225 = vunpack.c.l.b16 %v191
  %v226 = vunpack.c.h.b16 %v191
  %v227 = vunpack.c.l.b16 %v192
  %v228 = vunpack.c.h.b16 %v192
  %v229 = vunpack.c.l.b16 %v193
  %v230 = vunpack.c.h.b16 %v193
  %v231 = vunpack.c.l.b16 %v194
  %v232 = vunpack.c.h.b16 %v194
  %v233 = vunpack.c.l.b16 %v195
  %v234 = vunpack.c.h.b16 %v195
  %v235 = vunpack.c.l.b16 %v196
  %v236 = vunpack.c.h.b16 %v196
  %v237 = vpack.c.b16 %v223, %v221
  %v238 = vpack.c.b16 %v224, %v222
  %v239 = vpack.c.b16 %v227, %v225
  %v240 = vpack.c.b16 %v228, %v226
  %v241 = vpack.c.b16 %v231, %v229
  %v242 = vpack.c.b16 %v232, %v230
  %v243 = vpack.c.b16 %v235, %v233
  %v244 = vpack.c.b16 %v236, %v234
  %vm253 = vcmask 523264
  %v255 = vsel %vm253, 0, 0
  %257 = vmatprep.subr.bf16.mxu0 0
  %258 = vmatpush1.bf16.msra.mxu0 0
  %259 = vmatprep.subr.bf16.mxu0 0
  %260 = vmatpush1.bf16.msra.mxu0 0
  %261 = vmatprep.subr.bf16.mxu0 0
  %262 = vmatpush1.bf16.msra.mxu0 0
  %263 = vmatprep.subr.bf16.mxu0 0
  %264 = vmatpush1.bf16.msra.mxu0 0
  %265 = vmatprep.subr.bf16.mxu0 %v244
  %266 = vmatpush1.bf16.msra.mxu0 %v243
  %267 = vmatprep.subr.bf16.mxu0 %v242
  %268 = vmatpush1.bf16.msra.mxu0 %v241
  %269 = vmatprep.subr.bf16.mxu0 %v240
  %270 = vmatpush1.bf16.msra.mxu0 %v239
  %271 = vmatprep.subr.bf16.mxu0 %v238
  %272 = vmatpush1.bf16.msra.mxu0 %v237
  %273 = vmatprep.subr.bf16.mxu0 0
  %274 = vmatpush2.bf16.msra.mxu0 0
  %275 = vmatprep.subr.bf16.mxu0 0
  %276 = vmatpush2.bf16.msra.mxu0 0
  %277 = vmatprep.subr.bf16.mxu0 0
  %278 = vmatpush2.bf16.msra.mxu0 0
  %279 = vmatprep.subr.bf16.mxu0 0
  %280 = vmatpush2.bf16.msra.mxu0 0
  %281 = vmatprep.subr.bf16.mxu0 0
  %282 = vmatpush2.bf16.msra.mxu0 0
  %283 = vmatprep.subr.bf16.mxu0 0
  %284 = vmatpush2.bf16.msra.mxu0 0
  %285 = vmatprep.subr.bf16.mxu0 0
  %286 = vmatpush2.bf16.msra.mxu0 0
  %287 = vmatprep.subr.bf16.mxu0 0
  %288 = vmatpush2.bf16.msra.mxu0 0
  %289 = vmatprep.mubr.bf16.mxu0 0
  %290 = vmatmul.mubr.bf16.gmra.mxu0 %v255
  %v291 = vpop.f32.mrf.mxu0
  %v292 = vadd.f32 0.0, %v291
  %v293 = vpop.f32.mrf.mxu0
  %v294 = vadd.f32 0.0, %v293
  %v295 = vpop.f32.mrf.mxu0
  %v296 = vpop.f32.mrf.mxu0
  %297 = vdwg.mxu0
  %v298 = vadd.f32 %v143, %v292
  %v299 = vadd.f32 %v145, %v294
  %v300 = vtanh.pop %v298
  %v301 = vtanh.pop %v299
  %v302 = vmul.f32 %v300, 0.5
  %v303 = vadd.f32 %v302, 0.5
  %v304 = vmul.f32 %v301, 0.5
  %v305 = vadd.f32 %v304, 0.5
  %v306 = vmul.f32 %v303, 0.0
  %v307 = vmul.f32 %v303, %v301
  %309 = vrot.lane.b32.xlu0 %v307, 64
  %v310 = vpop.permute.xlu0 %309
  %v312 = vadd.f32 %v306, %v310
  %v313 = vtanh.pop %v312
  %v314 = vmul.f32 %v305, %v313
  %316 = vrot.lane.b32.xlu0 %v314, 64
  %v317 = vpop.permute.xlu0 %316
  %v319 = vsel %vm205, %v317, 0.0
  %321 = vrot.lane.b32.xlu0 %v312, 64
  %v322 = vpop.permute.xlu0 %321
  %v324 = vsel %vm205, %v322, 0.0
  %v325 = vpack.c.bf16 %v319, %v319
  %v327 = vsel %vm253, %v325, 0
  %329 = vmatprep.subr.bf16.mxu0 0
  %330 = vmatpush1.bf16.msra.mxu0 0
  %331 = vmatprep.subr.bf16.mxu0 0
  %332 = vmatpush1.bf16.msra.mxu0 0
  %333 = vmatprep.subr.bf16.mxu0 0
  %334 = vmatpush1.bf16.msra.mxu0 0
  %335 = vmatprep.subr.bf16.mxu0 0
  %336 = vmatpush1.bf16.msra.mxu0 0
  %337 = vmatprep.subr.bf16.mxu0 %v244
  %338 = vmatpush1.bf16.msra.mxu0 %v243
  %339 = vmatprep.subr.bf16.mxu0 %v242
  %340 = vmatpush1.bf16.msra.mxu0 %v241
  %341 = vmatprep.subr.bf16.mxu0 %v240
  %342 = vmatpush1.bf16.msra.mxu0 %v239
  %343 = vmatprep.subr.bf16.mxu0 %v238
  %344 = vmatpush1.bf16.msra.mxu0 %v237
  %345 = vmatprep.subr.bf16.mxu0 0
  %346 = vmatpush2.bf16.msra.mxu0 0
  %347 = vmatprep.subr.bf16.mxu0 0
  %348 = vmatpush2.bf16.msra.mxu0 0
  %349 = vmatprep.subr.bf16.mxu0 0
  %350 = vmatpush2.bf16.msra.mxu0 0
  %351 = vmatprep.subr.bf16.mxu0 0
  %352 = vmatpush2.bf16.msra.mxu0 0
  %353 = vmatprep.subr.bf16.mxu0 0
  %354 = vmatpush2.bf16.msra.mxu0 0
  %355 = vmatprep.subr.bf16.mxu0 0
  %356 = vmatpush2.bf16.msra.mxu0 0
  %357 = vmatprep.subr.bf16.mxu0 0
  %358 = vmatpush2.bf16.msra.mxu0 0
  %359 = vmatprep.subr.bf16.mxu0 0
  %360 = vmatpush2.bf16.msra.mxu0 0
  %361 = vmatprep.mubr.bf16.mxu0 0
  %362 = vmatmul.mubr.bf16.gmra.mxu0 %v327
  %v363 = vpop.f32.mrf.mxu0
  %v364 = vadd.f32 0.0, %v363
  %v365 = vpop.f32.mrf.mxu0
  %v366 = vadd.f32 0.0, %v365
  %v367 = vpop.f32.mrf.mxu0
  %v368 = vpop.f32.mrf.mxu0
  %369 = vdwg.mxu0
  %v370 = vadd.f32 %v149, %v364
  %v371 = vadd.f32 %v151, %v366
  %v372 = vtanh.pop %v370
  %v373 = vtanh.pop %v371
  %v374 = vmul.f32 %v372, 0.5
  %v375 = vadd.f32 %v374, 0.5
  %v376 = vmul.f32 %v373, 0.5
  %v377 = vadd.f32 %v376, 0.5
  %379 = vrot.lane.b32.xlu0 %v324, 64
  %v380 = vpop.permute.xlu0 %379
  %v382 = vmul.f32 %v375, %v380
  %v383 = vmul.f32 %v375, %v373
  %385 = vrot.lane.b32.xlu0 %v383, 64
  %v386 = vpop.permute.xlu0 %385
  %v388 = vadd.f32 %v382, %v386
  %v389 = vtanh.pop %v388
  %v390 = vmul.f32 %v377, %v389
  %392 = vrot.lane.b32.xlu0 %v390, 64
  %v393 = vpop.permute.xlu0 %392
  %v395 = vsel %vm206, %v393, %v319
  %397 = vrot.lane.b32.xlu0 %v388, 64
  %v398 = vpop.permute.xlu0 %397
  %v400 = vsel %vm206, %v398, %v324
  %v401 = vsel %vm206, %v393, 0.0
  %v402 = vpack.c.bf16 %v395, %v395
  %v404 = vsel %vm253, %v402, 0
  %406 = vmatprep.subr.bf16.mxu0 0
  %407 = vmatpush1.bf16.msra.mxu0 0
  %408 = vmatprep.subr.bf16.mxu0 0
  %409 = vmatpush1.bf16.msra.mxu0 0
  %410 = vmatprep.subr.bf16.mxu0 0
  %411 = vmatpush1.bf16.msra.mxu0 0
  %412 = vmatprep.subr.bf16.mxu0 0
  %413 = vmatpush1.bf16.msra.mxu0 0
  %414 = vmatprep.subr.bf16.mxu0 %v244
  %415 = vmatpush1.bf16.msra.mxu0 %v243
  %416 = vmatprep.subr.bf16.mxu0 %v242
  %417 = vmatpush1.bf16.msra.mxu0 %v241
  %418 = vmatprep.subr.bf16.mxu0 %v240
  %419 = vmatpush1.bf16.msra.mxu0 %v239
  %420 = vmatprep.subr.bf16.mxu0 %v238
  %421 = vmatpush1.bf16.msra.mxu0 %v237
  %422 = vmatprep.subr.bf16.mxu0 0
  %423 = vmatpush2.bf16.msra.mxu0 0
  %424 = vmatprep.subr.bf16.mxu0 0
  %425 = vmatpush2.bf16.msra.mxu0 0
  %426 = vmatprep.subr.bf16.mxu0 0
  %427 = vmatpush2.bf16.msra.mxu0 0
  %428 = vmatprep.subr.bf16.mxu0 0
  %429 = vmatpush2.bf16.msra.mxu0 0
  %430 = vmatprep.subr.bf16.mxu0 0
  %431 = vmatpush2.bf16.msra.mxu0 0
  %432 = vmatprep.subr.bf16.mxu0 0
  %433 = vmatpush2.bf16.msra.mxu0 0
  %434 = vmatprep.subr.bf16.mxu0 0
  %435 = vmatpush2.bf16.msra.mxu0 0
  %436 = vmatprep.subr.bf16.mxu0 0
  %437 = vmatpush2.bf16.msra.mxu0 0
  %438 = vmatprep.mubr.bf16.mxu0 0
  %439 = vmatmul.mubr.bf16.gmra.mxu0 %v404
  %v440 = vpop.f32.mrf.mxu0
  %v441 = vadd.f32 0.0, %v440
  %v442 = vpop.f32.mrf.mxu0
  %v443 = vadd.f32 0.0, %v442
  %v444 = vpop.f32.mrf.mxu0
  %v445 = vpop.f32.mrf.mxu0
  %446 = vdwg.mxu0
  %v447 = vadd.f32 %v155, %v441
  %v448 = vadd.f32 %v157, %v443
  %v449 = vtanh.pop %v447
  %v450 = vtanh.pop %v448
  %v451 = vmul.f32 %v449, 0.5
  %v452 = vadd.f32 %v451, 0.5
  %v453 = vmul.f32 %v450, 0.5
  %v454 = vadd.f32 %v453, 0.5
  %456 = vrot.lane.b32.xlu0 %v400, 64
  %v457 = vpop.permute.xlu0 %456
  %v459 = vmul.f32 %v452, %v457
  %v460 = vmul.f32 %v452, %v450
  %462 = vrot.lane.b32.xlu0 %v460, 64
  %v463 = vpop.permute.xlu0 %462
  %v465 = vadd.f32 %v459, %v463
  %v466 = vtanh.pop %v465
  %v467 = vmul.f32 %v454, %v466
  %469 = vrot.lane.b32.xlu0 %v467, 64
  %v470 = vpop.permute.xlu0 %469
  %v472 = vsel %vm207, %v470, %v395
  %474 = vrot.lane.b32.xlu0 %v465, 64
  %v475 = vpop.permute.xlu0 %474
  %v477 = vsel %vm207, %v475, %v400
  %v478 = vsel %vm207, %v470, 0.0
  %v479 = vpack.c.bf16 %v472, %v472
  %v481 = vsel %vm253, %v479, 0
  %483 = vmatprep.subr.bf16.mxu0 0
  %484 = vmatpush1.bf16.msra.mxu0 0
  %485 = vmatprep.subr.bf16.mxu0 0
  %486 = vmatpush1.bf16.msra.mxu0 0
  %487 = vmatprep.subr.bf16.mxu0 0
  %488 = vmatpush1.bf16.msra.mxu0 0
  %489 = vmatprep.subr.bf16.mxu0 0
  %490 = vmatpush1.bf16.msra.mxu0 0
  %491 = vmatprep.subr.bf16.mxu0 %v244
  %492 = vmatpush1.bf16.msra.mxu0 %v243
  %493 = vmatprep.subr.bf16.mxu0 %v242
  %494 = vmatpush1.bf16.msra.mxu0 %v241
  %495 = vmatprep.subr.bf16.mxu0 %v240
  %496 = vmatpush1.bf16.msra.mxu0 %v239
  %497 = vmatprep.subr.bf16.mxu0 %v238
  %498 = vmatpush1.bf16.msra.mxu0 %v237
  %499 = vmatprep.subr.bf16.mxu0 0
  %500 = vmatpush2.bf16.msra.mxu0 0
  %501 = vmatprep.subr.bf16.mxu0 0
  %502 = vmatpush2.bf16.msra.mxu0 0
  %503 = vmatprep.subr.bf16.mxu0 0
  %504 = vmatpush2.bf16.msra.mxu0 0
  %505 = vmatprep.subr.bf16.mxu0 0
  %506 = vmatpush2.bf16.msra.mxu0 0
  %507 = vmatprep.subr.bf16.mxu0 0
  %508 = vmatpush2.bf16.msra.mxu0 0
  %509 = vmatprep.subr.bf16.mxu0 0
  %510 = vmatpush2.bf16.msra.mxu0 0
  %511 = vmatprep.subr.bf16.mxu0 0
  %512 = vmatpush2.bf16.msra.mxu0 0
  %513 = vmatprep.subr.bf16.mxu0 0
  %514 = vmatpush2.bf16.msra.mxu0 0
  %515 = vmatprep.mubr.bf16.mxu0 0
  %516 = vmatmul.mubr.bf16.gmra.mxu0 %v481
  %v517 = vpop.f32.mrf.mxu0
  %v518 = vadd.f32 0.0, %v517
  %v519 = vpop.f32.mrf.mxu0
  %v520 = vadd.f32 0.0, %v519
  %v521 = vpop.f32.mrf.mxu0
  %v522 = vpop.f32.mrf.mxu0
  %523 = vdwg.mxu0
  %v524 = vadd.f32 %v161, %v518
  %v525 = vadd.f32 %v163, %v520
  %v526 = vtanh.pop %v524
  %v527 = vtanh.pop %v525
  %v528 = vmul.f32 %v526, 0.5
  %v529 = vadd.f32 %v528, 0.5
  %v530 = vmul.f32 %v527, 0.5
  %v531 = vadd.f32 %v530, 0.5
  %533 = vrot.lane.b32.xlu0 %v477, 64
  %v534 = vpop.permute.xlu0 %533
  %v536 = vmul.f32 %v529, %v534
  %v537 = vmul.f32 %v529, %v527
  %539 = vrot.lane.b32.xlu0 %v537, 64
  %v540 = vpop.permute.xlu0 %539
  %v542 = vadd.f32 %v536, %v540
  %v543 = vtanh.pop %v542
  %v544 = vmul.f32 %v531, %v543
  %546 = vrot.lane.b32.xlu0 %v544, 64
  %v547 = vpop.permute.xlu0 %546
  %v549 = vsel %vm208, %v547, %v472
  %551 = vrot.lane.b32.xlu0 %v542, 64
  %v552 = vpop.permute.xlu0 %551
  %v554 = vsel %vm208, %v552, %v477
  %v555 = vsel %vm208, %v547, 0.0
  %v556 = vpack.c.bf16 %v549, %v549
  %v558 = vsel %vm253, %v556, 0
  %560 = vmatprep.subr.bf16.mxu0 0
  %561 = vmatpush1.bf16.msra.mxu0 0
  %562 = vmatprep.subr.bf16.mxu0 0
  %563 = vmatpush1.bf16.msra.mxu0 0
  %564 = vmatprep.subr.bf16.mxu0 0
  %565 = vmatpush1.bf16.msra.mxu0 0
  %566 = vmatprep.subr.bf16.mxu0 0
  %567 = vmatpush1.bf16.msra.mxu0 0
  %568 = vmatprep.subr.bf16.mxu0 %v244
  %569 = vmatpush1.bf16.msra.mxu0 %v243
  %570 = vmatprep.subr.bf16.mxu0 %v242
  %571 = vmatpush1.bf16.msra.mxu0 %v241
  %572 = vmatprep.subr.bf16.mxu0 %v240
  %573 = vmatpush1.bf16.msra.mxu0 %v239
  %574 = vmatprep.subr.bf16.mxu0 %v238
  %575 = vmatpush1.bf16.msra.mxu0 %v237
  %576 = vmatprep.subr.bf16.mxu0 0
  %577 = vmatpush2.bf16.msra.mxu0 0
  %578 = vmatprep.subr.bf16.mxu0 0
  %579 = vmatpush2.bf16.msra.mxu0 0
  %580 = vmatprep.subr.bf16.mxu0 0
  %581 = vmatpush2.bf16.msra.mxu0 0
  %582 = vmatprep.subr.bf16.mxu0 0
  %583 = vmatpush2.bf16.msra.mxu0 0
  %584 = vmatprep.subr.bf16.mxu0 0
  %585 = vmatpush2.bf16.msra.mxu0 0
  %586 = vmatprep.subr.bf16.mxu0 0
  %587 = vmatpush2.bf16.msra.mxu0 0
  %588 = vmatprep.subr.bf16.mxu0 0
  %589 = vmatpush2.bf16.msra.mxu0 0
  %590 = vmatprep.subr.bf16.mxu0 0
  %591 = vmatpush2.bf16.msra.mxu0 0
  %592 = vmatprep.mubr.bf16.mxu0 0
  %593 = vmatmul.mubr.bf16.gmra.mxu0 %v558
  %v594 = vpop.f32.mrf.mxu0
  %v595 = vadd.f32 0.0, %v594
  %v596 = vpop.f32.mrf.mxu0
  %v597 = vadd.f32 0.0, %v596
  %v598 = vpop.f32.mrf.mxu0
  %v599 = vpop.f32.mrf.mxu0
  %600 = vdwg.mxu0
  %v601 = vadd.f32 %v167, %v595
  %v602 = vadd.f32 %v169, %v597
  %v603 = vtanh.pop %v601
  %v604 = vtanh.pop %v602
  %v605 = vmul.f32 %v603, 0.5
  %v606 = vadd.f32 %v605, 0.5
  %v607 = vmul.f32 %v604, 0.5
  %v608 = vadd.f32 %v607, 0.5
  %610 = vrot.lane.b32.xlu0 %v554, 64
  %v611 = vpop.permute.xlu0 %610
  %v613 = vmul.f32 %v606, %v611
  %v614 = vmul.f32 %v606, %v604
  %616 = vrot.lane.b32.xlu0 %v614, 64
  %v617 = vpop.permute.xlu0 %616
  %v619 = vadd.f32 %v613, %v617
  %v620 = vtanh.pop %v619
  %v621 = vmul.f32 %v608, %v620
  %623 = vrot.lane.b32.xlu0 %v621, 64
  %v624 = vpop.permute.xlu0 %623
  %v626 = vsel %vm209, %v624, %v549
  %628 = vrot.lane.b32.xlu0 %v619, 64
  %v629 = vpop.permute.xlu0 %628
  %v631 = vsel %vm209, %v629, %v554
  %v632 = vsel %vm209, %v624, 0.0
  %v633 = vpack.c.bf16 %v626, %v626
  %v635 = vsel %vm253, %v633, 0
  %637 = vmatprep.subr.bf16.mxu0 0
  %638 = vmatpush1.bf16.msra.mxu0 0
  %639 = vmatprep.subr.bf16.mxu0 0
  %640 = vmatpush1.bf16.msra.mxu0 0
  %641 = vmatprep.subr.bf16.mxu0 0
  %642 = vmatpush1.bf16.msra.mxu0 0
  %643 = vmatprep.subr.bf16.mxu0 0
  %644 = vmatpush1.bf16.msra.mxu0 0
  %645 = vmatprep.subr.bf16.mxu0 %v244
  %646 = vmatpush1.bf16.msra.mxu0 %v243
  %647 = vmatprep.subr.bf16.mxu0 %v242
  %648 = vmatpush1.bf16.msra.mxu0 %v241
  %649 = vmatprep.subr.bf16.mxu0 %v240
  %650 = vmatpush1.bf16.msra.mxu0 %v239
  %651 = vmatprep.subr.bf16.mxu0 %v238
  %652 = vmatpush1.bf16.msra.mxu0 %v237
  %653 = vmatprep.subr.bf16.mxu0 0
  %654 = vmatpush2.bf16.msra.mxu0 0
  %655 = vmatprep.subr.bf16.mxu0 0
  %656 = vmatpush2.bf16.msra.mxu0 0
  %657 = vmatprep.subr.bf16.mxu0 0
  %658 = vmatpush2.bf16.msra.mxu0 0
  %659 = vmatprep.subr.bf16.mxu0 0
  %660 = vmatpush2.bf16.msra.mxu0 0
  %661 = vmatprep.subr.bf16.mxu0 0
  %662 = vmatpush2.bf16.msra.mxu0 0
  %663 = vmatprep.subr.bf16.mxu0 0
  %664 = vmatpush2.bf16.msra.mxu0 0
  %665 = vmatprep.subr.bf16.mxu0 0
  %666 = vmatpush2.bf16.msra.mxu0 0
  %667 = vmatprep.subr.bf16.mxu0 0
  %668 = vmatpush2.bf16.msra.mxu0 0
  %669 = vmatprep.mubr.bf16.mxu0 0
  %670 = vmatmul.mubr.bf16.gmra.mxu0 %v635
  %v671 = vpop.f32.mrf.mxu0
  %v672 = vadd.f32 0.0, %v671
  %v673 = vpop.f32.mrf.mxu0
  %v674 = vadd.f32 0.0, %v673
  %v675 = vpop.f32.mrf.mxu0
  %v676 = vpop.f32.mrf.mxu0
  %677 = vdwg.mxu0
  %v678 = vadd.f32 %v173, %v672
  %v679 = vadd.f32 %v175, %v674
  %v680 = vtanh.pop %v678
  %v681 = vtanh.pop %v679
  %v682 = vmul.f32 %v680, 0.5
  %v683 = vadd.f32 %v682, 0.5
  %v684 = vmul.f32 %v681, 0.5
  %v685 = vadd.f32 %v684, 0.5
  %687 = vrot.lane.b32.xlu0 %v631, 64
  %v688 = vpop.permute.xlu0 %687
  %v690 = vmul.f32 %v683, %v688
  %v691 = vmul.f32 %v683, %v681
  %693 = vrot.lane.b32.xlu0 %v691, 64
  %v694 = vpop.permute.xlu0 %693
  %v696 = vadd.f32 %v690, %v694
  %v697 = vtanh.pop %v696
  %v698 = vmul.f32 %v685, %v697
  %700 = vrot.lane.b32.xlu0 %v698, 64
  %v701 = vpop.permute.xlu0 %700
  %v703 = vsel %vm210, %v701, %v626
  %705 = vrot.lane.b32.xlu0 %v696, 64
  %v706 = vpop.permute.xlu0 %705
  %v708 = vsel %vm210, %v706, %v631
  %v709 = vsel %vm210, %v701, 0.0
  %v710 = vpack.c.bf16 %v703, %v703
  %v712 = vsel %vm253, %v710, 0
  %714 = vmatprep.subr.bf16.mxu0 0
  %715 = vmatpush1.bf16.msra.mxu0 0
  %716 = vmatprep.subr.bf16.mxu0 0
  %717 = vmatpush1.bf16.msra.mxu0 0
  %718 = vmatprep.subr.bf16.mxu0 0
  %719 = vmatpush1.bf16.msra.mxu0 0
  %720 = vmatprep.subr.bf16.mxu0 0
  %721 = vmatpush1.bf16.msra.mxu0 0
  %722 = vmatprep.subr.bf16.mxu0 %v244
  %723 = vmatpush1.bf16.msra.mxu0 %v243
  %724 = vmatprep.subr.bf16.mxu0 %v242
  %725 = vmatpush1.bf16.msra.mxu0 %v241
  %726 = vmatprep.subr.bf16.mxu0 %v240
  %727 = vmatpush1.bf16.msra.mxu0 %v239
  %728 = vmatprep.subr.bf16.mxu0 %v238
  %729 = vmatpush1.bf16.msra.mxu0 %v237
  %730 = vmatprep.subr.bf16.mxu0 0
  %731 = vmatpush2.bf16.msra.mxu0 0
  %732 = vmatprep.subr.bf16.mxu0 0
  %733 = vmatpush2.bf16.msra.mxu0 0
  %734 = vmatprep.subr.bf16.mxu0 0
  %735 = vmatpush2.bf16.msra.mxu0 0
  %736 = vmatprep.subr.bf16.mxu0 0
  %737 = vmatpush2.bf16.msra.mxu0 0
  %738 = vmatprep.subr.bf16.mxu0 0
  %739 = vmatpush2.bf16.msra.mxu0 0
  %740 = vmatprep.subr.bf16.mxu0 0
  %741 = vmatpush2.bf16.msra.mxu0 0
  %742 = vmatprep.subr.bf16.mxu0 0
  %743 = vmatpush2.bf16.msra.mxu0 0
  %744 = vmatprep.subr.bf16.mxu0 0
  %745 = vmatpush2.bf16.msra.mxu0 0
  %746 = vmatprep.mubr.bf16.mxu0 0
  %747 = vmatmul.mubr.bf16.gmra.mxu0 %v712
  %v748 = vpop.f32.mrf.mxu0
  %v749 = vadd.f32 0.0, %v748
  %v750 = vpop.f32.mrf.mxu0
  %v751 = vadd.f32 0.0, %v750
  %v752 = vpop.f32.mrf.mxu0
  %v753 = vpop.f32.mrf.mxu0
  %754 = vdwg.mxu0
  %v755 = vadd.f32 %v179, %v749
  %v756 = vadd.f32 %v181, %v751
  %v757 = vtanh.pop %v755
  %v758 = vtanh.pop %v756
  %v759 = vmul.f32 %v757, 0.5
  %v760 = vadd.f32 %v759, 0.5
  %v761 = vmul.f32 %v758, 0.5
  %v762 = vadd.f32 %v761, 0.5
  %764 = vrot.lane.b32.xlu0 %v708, 64
  %v765 = vpop.permute.xlu0 %764
  %v767 = vmul.f32 %v760, %v765
  %v768 = vmul.f32 %v760, %v758
  %770 = vrot.lane.b32.xlu0 %v768, 64
  %v771 = vpop.permute.xlu0 %770
  %v773 = vadd.f32 %v767, %v771
  %v774 = vtanh.pop %v773
  %v775 = vmul.f32 %v762, %v774
  %777 = vrot.lane.b32.xlu0 %v775, 64
  %v778 = vpop.permute.xlu0 %777
  %v780 = vsel %vm211, %v778, %v703
  %782 = vrot.lane.b32.xlu0 %v773, 64
  %v783 = vpop.permute.xlu0 %782
  %v785 = vsel %vm211, %v783, %v708
  %v786 = vsel %vm211, %v778, 0.0
  %v787 = vpack.c.bf16 %v780, %v780
  %v789 = vsel %vm253, %v787, 0
  %791 = vmatprep.subr.bf16.mxu0 0
  %792 = vmatpush1.bf16.msra.mxu0 0
  %793 = vmatprep.subr.bf16.mxu0 0
  %794 = vmatpush1.bf16.msra.mxu0 0
  %795 = vmatprep.subr.bf16.mxu0 0
  %796 = vmatpush1.bf16.msra.mxu0 0
  %797 = vmatprep.subr.bf16.mxu0 0
  %798 = vmatpush1.bf16.msra.mxu0 0
  %799 = vmatprep.subr.bf16.mxu0 %v244
  %800 = vmatpush1.bf16.msra.mxu0 %v243
  %801 = vmatprep.subr.bf16.mxu0 %v242
  %802 = vmatpush1.bf16.msra.mxu0 %v241
  %803 = vmatprep.subr.bf16.mxu0 %v240
  %804 = vmatpush1.bf16.msra.mxu0 %v239
  %805 = vmatprep.subr.bf16.mxu0 %v238
  %806 = vmatpush1.bf16.msra.mxu0 %v237
  %807 = vmatprep.subr.bf16.mxu0 0
  %808 = vmatpush2.bf16.msra.mxu0 0
  %809 = vmatprep.subr.bf16.mxu0 0
  %810 = vmatpush2.bf16.msra.mxu0 0
  %811 = vmatprep.subr.bf16.mxu0 0
  %812 = vmatpush2.bf16.msra.mxu0 0
  %813 = vmatprep.subr.bf16.mxu0 0
  %814 = vmatpush2.bf16.msra.mxu0 0
  %815 = vmatprep.subr.bf16.mxu0 0
  %816 = vmatpush2.bf16.msra.mxu0 0
  %817 = vmatprep.subr.bf16.mxu0 0
  %818 = vmatpush2.bf16.msra.mxu0 0
  %819 = vmatprep.subr.bf16.mxu0 0
  %820 = vmatpush2.bf16.msra.mxu0 0
  %821 = vmatprep.subr.bf16.mxu0 0
  %822 = vmatpush2.bf16.msra.mxu0 0
  %823 = vmatprep.mubr.bf16.mxu0 0
  %824 = vmatmul.mubr.bf16.gmra.mxu0 %v789
  %v825 = vpop.f32.mrf.mxu0
  %v826 = vadd.f32 0.0, %v825
  %v827 = vpop.f32.mrf.mxu0
  %v828 = vadd.f32 0.0, %v827
  %v829 = vpop.f32.mrf.mxu0
  %v830 = vpop.f32.mrf.mxu0
  %831 = vdwg.mxu0
  %v832 = vadd.f32 %v185, %v826
  %v833 = vadd.f32 %v187, %v828
  %v834 = vtanh.pop %v832
  %v835 = vtanh.pop %v833
  %v836 = vmul.f32 %v834, 0.5
  %v837 = vadd.f32 %v836, 0.5
  %v838 = vmul.f32 %v835, 0.5
  %v839 = vadd.f32 %v838, 0.5
  %841 = vrot.lane.b32.xlu0 %v785, 64
  %v842 = vpop.permute.xlu0 %841
  %v844 = vmul.f32 %v837, %v842
  %v845 = vmul.f32 %v837, %v835
  %847 = vrot.lane.b32.xlu0 %v845, 64
  %v848 = vpop.permute.xlu0 %847
  %v850 = vadd.f32 %v844, %v848
  %v851 = vtanh.pop %v850
  %v852 = vmul.f32 %v839, %v851
  %854 = vrot.lane.b32.xlu0 %v852, 64
  %v855 = vpop.permute.xlu0 %854
  %v857 = vsel %vm212, %v855, %v780
  %v858 = vsel %vm212, %v855, 0.0
  %860 = vrot.lane.b32.xlu0 %v401, 64
  %v861 = vpop.permute.xlu0 %860
  %864 = vrot.lane.b32.xlu0 %v555, 64
  %v865 = vpop.permute.xlu0 %864
  %868 = vrot.lane.b32.xlu0 %v709, 64
  %v869 = vpop.permute.xlu0 %868
  %872 = vrot.lane.b32.xlu0 %v858, 64
  %v873 = vpop.permute.xlu0 %872
  %v875 = vsel %vm253, %v319, %v861
  %v876 = vsel %vm253, %v478, %v865
  %v877 = vsel %vm253, %v632, %v869
  %v878 = vsel %vm253, %v786, %v873
  %879 = vst [vmem:[%s5] sm:$0xff] %v875
  %880 = vst [vmem:[%s5 + $0x8] sm:$0xff] %v876
  %881 = vst [vmem:[%s5 + $0x10] sm:$0xff] %v877
  %882 = vst [vmem:[%s5 + $0x18] sm:$0xff] %v878
  %883 = vst.msk [vmem:[%s6] sm:$0xff] %vm253, %v857
  // Predicated region
  $region22: #{lstm_encoder_forward.1} parent=0 // pred_check
    _
  $region23: #{lstm_encoder_forward.1} parent=0 // pred_check_branch
    %885 = sbr.rel (0) target = $region25
  $region24: #{lstm_encoder_forward.1} parent=0 // pred_region
    _
  $region25: #{lstm_encoder_forward.1} parent=0 // pred_fallthru
    _
  // Predicated region
  $region26: #{lstm_encoder_forward.1} parent=0 // pred_check
    _
  $region27: #{lstm_encoder_forward.1} parent=0 // pred_check_branch
    %887 = sbr.rel (0) target = $region29
  $region28: #{lstm_encoder_forward.1} parent=0 // pred_region
    _
  $region29: #{lstm_encoder_forward.1} parent=0 // pred_fallthru
    _
  // Predicated region
  $region30: #{lstm_encoder_forward.1} parent=0 // pred_check
    _
  $region31: #{lstm_encoder_forward.1} parent=0 // pred_check_branch
    %889 = sbr.rel (0) target = $region33
  $region32: #{lstm_encoder_forward.1} parent=0 // pred_region
    _
  $region33: #{lstm_encoder_forward.1} parent=0 // pred_fallthru
    _
  // Predicated region
  $region34: #{lstm_encoder_forward.1} parent=0 // pred_check
    _
  $region35: #{lstm_encoder_forward.1} parent=0 // pred_check_branch
    %891 = sbr.rel (0) target = $region37
  $region36: #{lstm_encoder_forward.1} parent=0 // pred_region
    _
  $region37: #{lstm_encoder_forward.1} parent=0 // pred_fallthru
    _

</llo_original>
